<compile_context>
chip_gen: v7x
topology: tpu7x:2x2x1
jax: 0.10.0
libtpu: 0.0.40
codegen_flags: <defaults>
</compile_context>

<pallas_src>
import jax
import jax.numpy as jnp
from jax.experimental import pallas as pl
from jax.experimental.pallas import tpu as pltpu

HIDDEN = 64
LN_EPS = 1e-5
PACK_ROWS = 16  # 9 (b/g/be x3) + 1 (w4 row) + 1 (b4 row) + 5 pad


def _round_up(x, m):
    return ((x + m - 1) // m) * m


def _value_kernel(x_ref, w1_ref, w2_ref, w3_ref, p_ref, o_ref):
    x = x_ref[...]
    p = p_ref[...]  # (PACK_ROWS, 64) packed small params

    def lin_ln_relu(h, w, b, g, be):
        # Linear on the MXU with f32 accumulation. Weights/bias are
        # pre-centered in the wrapper, so y is zero-mean analytically.
        y = jnp.dot(h, w, preferred_element_type=jnp.float32) + b
        # LayerNorm (biased variance, eps=1e-5); mean term dropped (y ~ zero-mean).
        var = jnp.mean(y * y, axis=-1, keepdims=True)
        yn = y * jax.lax.rsqrt(var + LN_EPS)
        yn = yn * g + be
        # ReLU on the VPU.
        return jnp.maximum(yn, 0.0)

    h = lin_ln_relu(x, w1_ref[...], p[0:1], p[1:2], p[2:3])
    h = lin_ln_relu(h, w2_ref[...], p[3:4], p[4:5], p[5:6])
    h = lin_ln_relu(h, w3_ref[...], p[6:7], p[7:8], p[8:9])

    # Final Linear(64, 1) in transposed form so the output tile is lane-dense:
    # out^T (1, TB) = w4 (1, 64) @ h^T (64, TB), plus bias.
    w4_row = p[9:10]        # (1, 64)
    b4 = p[10:11, 0:1]      # (1, 1)
    out_t = jnp.dot(w4_row, h.T, preferred_element_type=jnp.float32) + b4
    o_ref[...] = out_t.astype(o_ref.dtype)


def prepare_params(params):
    """One-time transform of PyTorch-layout params into the kernel layout.

    - Centers the three LayerNorm-feeding Linear layers along the output axis
      (makes their pre-LN activations zero-mean by construction).
    - Packs all (1, 64) rows into a single (16, 64) slab.
    """
    def center(w, b):
        return w - jnp.mean(w, axis=1, keepdims=True), b - jnp.mean(b)

    w1, b1 = center(params["w1"], params["b1"])
    w2, b2 = center(params["w2"], params["b2"])
    w3, b3 = center(params["w3"], params["b3"])

    w4_row = params["w4"].T                                         # (1, 64)
    b4_row = jnp.broadcast_to(params["b4"].reshape(1, 1), (1, HIDDEN))

    packed = jnp.concatenate(
        [b1, params["g1"], params["be1"],
         b2, params["g2"], params["be2"],
         b3, params["g3"], params["be3"],
         w4_row, b4_row,
         jnp.zeros((PACK_ROWS - 11, HIDDEN), jnp.float32)],
        axis=0)                                                      # (16, 64)

    return {"w1": w1, "w2": w2, "w3": w3, "packed": packed}


def value_network_forward(state, prepared, *, block_batch=1024):
    """state: (B, state_dim) f32.  prepared: output of prepare_params.
    Returns (B, 1) f32."""
    B, state_dim = state.shape

    # Batch tile: sublane-aligned; when the batch is actually tiled (B > tile),
    # the tile must also be lane-aligned (mult. of 128) because the output
    # block's last dim is the batch tile (lane-dense output layout).
    if B <= block_batch:
        TB = _round_up(max(B, 1), 8)
    else:
        TB = _round_up(block_batch, 128)
    B_pad = _round_up(B, TB)
    if B_pad != B:
        state = jnp.pad(state, ((0, B_pad - B), (0, 0)))

    grid = (B_pad // TB,)
    const = lambda i: (0, 0)   # weights stay resident across grid steps

    out = pl.pallas_call(
        _value_kernel,
        out_shape=jax.ShapeDtypeStruct((1, B_pad), jnp.float32),
        grid=grid,
        in_specs=[
            pl.BlockSpec((TB, state_dim), lambda i: (i, 0)),
            pl.BlockSpec((state_dim, HIDDEN), const),
            pl.BlockSpec((HIDDEN, HIDDEN), const),
            pl.BlockSpec((HIDDEN, HIDDEN), const),
            pl.BlockSpec((PACK_ROWS, HIDDEN), const),
        ],
        out_specs=pl.BlockSpec((1, TB), lambda i: (0, i)),
        compiler_params=pltpu.CompilerParams(
            dimension_semantics=("parallel",)),
    )(state, prepared["w1"], prepared["w2"], prepared["w3"], prepared["packed"])

    # (1, B_pad) lane-dense slab -> (B, 1); contiguous reshape, no data movement.
    return out.reshape(B_pad, 1)[:B]


def init_params(key, state_dim):
    """Deterministic synthetic parameters (shapes match the PyTorch module)."""
    ks = jax.random.split(key, 8)

    def lin(kw, kb, fan_in, fan_out):
        # Uniform(-1/sqrt(fan_in), 1/sqrt(fan_in)), like torch.nn.Linear default.
        bound = 1.0 / jnp.sqrt(fan_in)
        w = jax.random.uniform(kw, (fan_in, fan_out), jnp.float32, -bound, bound)
        b = jax.random.uniform(kb, (1, fan_out), jnp.float32, -bound, bound)
        return w, b

    w1, b1 = lin(ks[0], ks[1], state_dim, HIDDEN)
    w2, b2 = lin(ks[2], ks[3], HIDDEN, HIDDEN)
    w3, b3 = lin(ks[4], ks[5], HIDDEN, HIDDEN)
    w4, b4 = lin(ks[6], ks[7], HIDDEN, 1)

    ones = jnp.ones((1, HIDDEN), jnp.float32)
    zeros = jnp.zeros((1, HIDDEN), jnp.float32)
    return {
        "w1": w1, "b1": b1, "g1": ones, "be1": zeros,
        "w2": w2, "b2": b2, "g2": ones, "be2": zeros,
        "w3": w3, "b3": b3, "g3": ones, "be3": zeros,
        "w4": w4, "b4": b4,
    }


def _reference(state, p):
    """Pure-JAX reference of the same forward pass (uncentered PyTorch math)."""
    def blk(h, w, b, g, be):
        y = h @ w + b
        mu = jnp.mean(y, -1, keepdims=True)
        var = jnp.mean((y - mu) ** 2, -1, keepdims=True)
        yn = (y - mu) / jnp.sqrt(var + LN_EPS) * g + be
        return jnp.maximum(yn, 0.0)

    h = blk(state, p["w1"], p["b1"], p["g1"], p["be1"])
    h = blk(h, p["w2"], p["b2"], p["g2"], p["be2"])
    h = blk(h, p["w3"], p["b3"], p["g3"], p["be3"])
    return h @ p["w4"] + p["b4"]


if __name__ == "__main__":
    key = jax.random.PRNGKey(0)
    k_x, k_p = jax.random.split(key)

    batch, state_dim = 8, 16
    state = jax.random.normal(k_x, (batch, state_dim), jnp.float32)
    params = init_params(k_p, state_dim)
    prepared = prepare_params(params)

    out = value_network_forward(state, prepared)
    out = jax.block_until_ready(out)

    ref = _reference(state, params)
    assert out.shape == (batch, 1)
    assert jnp.allclose(out, ref, atol=1e-4, rtol=1e-4)

    print("KERNEL_OK")
</pallas_src>

<mosaic_0001>
module attributes {stable_mosaic.version = 11 : i64} {
  func.func @_value_kernel(%arg0: i32, %arg1: memref<8x16xf32, #tpu.memory_space<vmem>>, %arg2: memref<16x64xf32, #tpu.memory_space<vmem>>, %arg3: memref<64x64xf32, #tpu.memory_space<vmem>>, %arg4: memref<64x64xf32, #tpu.memory_space<vmem>>, %arg5: memref<16x64xf32, #tpu.memory_space<vmem>>, %arg6: memref<1x8xf32, #tpu.memory_space<vmem>>) attributes {dimension_semantics = [#tpu.dimension_semantics<parallel>], iteration_bounds = array<i64: 1>, scalar_prefetch = 0 : i64, scratch_operands = 0 : i64, tpu.core_type = #tpu.core_type<tc>, window_params = [{transform_indices = @transform_0, window_bounds = array<i64: 8, 16>}, {pipeline_mode = #tpu.pipeline_mode<synchronous>, transform_indices = @transform_1, window_bounds = array<i64: 16, 64>}, {pipeline_mode = #tpu.pipeline_mode<synchronous>, transform_indices = @transform_2, window_bounds = array<i64: 64, 64>}, {pipeline_mode = #tpu.pipeline_mode<synchronous>, transform_indices = @transform_3, window_bounds = array<i64: 64, 64>}, {pipeline_mode = #tpu.pipeline_mode<synchronous>, transform_indices = @transform_4, window_bounds = array<i64: 16, 64>}, {transform_indices = @transform_5, window_bounds = array<i64: 1, 8>}]} {
    %c0 = arith.constant 0 : index
    %c0_0 = arith.constant 0 : index
    %0 = vector.load %arg1[%c0, %c0_0] : memref<8x16xf32, #tpu.memory_space<vmem>>, vector<8x16xf32>
    %c0_1 = arith.constant 0 : index
    %c0_2 = arith.constant 0 : index
    %1 = vector.load %arg5[%c0_1, %c0_2] : memref<16x64xf32, #tpu.memory_space<vmem>>, vector<16x64xf32>
    %c0_3 = arith.constant 0 : index
    %c0_4 = arith.constant 0 : index
    %2 = vector.load %arg2[%c0_3, %c0_4] : memref<16x64xf32, #tpu.memory_space<vmem>>, vector<16x64xf32>
    %3 = vector.extract_strided_slice %1 {offsets = [0, 0], sizes = [1, 64], strides = [1, 1]} : vector<16x64xf32> to vector<1x64xf32>
    %4 = vector.extract_strided_slice %1 {offsets = [1, 0], sizes = [1, 64], strides = [1, 1]} : vector<16x64xf32> to vector<1x64xf32>
    %5 = vector.extract_strided_slice %1 {offsets = [2, 0], sizes = [1, 64], strides = [1, 1]} : vector<16x64xf32> to vector<1x64xf32>
    %cst = arith.constant dense<0.000000e+00> : vector<8x64xf32>
    %6 = tpu.matmul %0, %2, %cst {dimension_numbers = #tpu.dot_dimension_numbers<[1], [0], [0], [1], [0, 0, 1, 1], [], []>} : vector<8x16xf32>, vector<16x64xf32>, vector<8x64xf32> -> vector<8x64xf32>
    %7 = vector.broadcast %3 : vector<1x64xf32> to vector<8x64xf32>
    %8 = arith.addf %6, %7 : vector<8x64xf32>
    %9 = arith.mulf %8, %8 : vector<8x64xf32>
    %cst_5 = arith.constant dense<0.000000e+00> : vector<8xf32>
    %10 = vector.multi_reduction <add>, %9, %cst_5 [1] : vector<8x64xf32> to vector<8xf32>
    %11 = vector.shape_cast %10 : vector<8xf32> to vector<8x1xf32>
    %cst_6 = arith.constant 6.400000e+01 : f32
    %12 = vector.broadcast %cst_6 : f32 to vector<8x1xf32>
    %13 = arith.divf %11, %12 : vector<8x1xf32>
    %cst_7 = arith.constant 9.99999974E-6 : f32
    %14 = vector.broadcast %cst_7 : f32 to vector<8x1xf32>
    %15 = arith.addf %13, %14 : vector<8x1xf32>
    %16 = math.rsqrt %15 : vector<8x1xf32>
    %17 = vector.broadcast %16 : vector<8x1xf32> to vector<8x64xf32>
    %18 = arith.mulf %8, %17 : vector<8x64xf32>
    %19 = vector.broadcast %4 : vector<1x64xf32> to vector<8x64xf32>
    %20 = arith.mulf %18, %19 : vector<8x64xf32>
    %21 = vector.broadcast %5 : vector<1x64xf32> to vector<8x64xf32>
    %22 = arith.addf %20, %21 : vector<8x64xf32>
    %cst_8 = arith.constant 0.000000e+00 : f32
    %23 = vector.broadcast %cst_8 : f32 to vector<8x64xf32>
    %24 = arith.maximumf %22, %23 : vector<8x64xf32>
    %c0_9 = arith.constant 0 : index
    %c0_10 = arith.constant 0 : index
    %25 = vector.load %arg3[%c0_9, %c0_10] : memref<64x64xf32, #tpu.memory_space<vmem>>, vector<64x64xf32>
    %26 = vector.extract_strided_slice %1 {offsets = [3, 0], sizes = [1, 64], strides = [1, 1]} : vector<16x64xf32> to vector<1x64xf32>
    %27 = vector.extract_strided_slice %1 {offsets = [4, 0], sizes = [1, 64], strides = [1, 1]} : vector<16x64xf32> to vector<1x64xf32>
    %28 = vector.extract_strided_slice %1 {offsets = [5, 0], sizes = [1, 64], strides = [1, 1]} : vector<16x64xf32> to vector<1x64xf32>
    %cst_11 = arith.constant dense<0.000000e+00> : vector<8x64xf32>
    %29 = tpu.matmul %24, %25, %cst_11 {dimension_numbers = #tpu.dot_dimension_numbers<[1], [0], [0], [1], [0, 0, 1, 1], [], []>} : vector<8x64xf32>, vector<64x64xf32>, vector<8x64xf32> -> vector<8x64xf32>
    %30 = vector.broadcast %26 : vector<1x64xf32> to vector<8x64xf32>
    %31 = arith.addf %29, %30 : vector<8x64xf32>
    %32 = arith.mulf %31, %31 : vector<8x64xf32>
    %cst_12 = arith.constant dense<0.000000e+00> : vector<8xf32>
    %33 = vector.multi_reduction <add>, %32, %cst_12 [1] : vector<8x64xf32> to vector<8xf32>
    %34 = vector.shape_cast %33 : vector<8xf32> to vector<8x1xf32>
    %cst_13 = arith.constant 6.400000e+01 : f32
    %35 = vector.broadcast %cst_13 : f32 to vector<8x1xf32>
    %36 = arith.divf %34, %35 : vector<8x1xf32>
    %cst_14 = arith.constant 9.99999974E-6 : f32
    %37 = vector.broadcast %cst_14 : f32 to vector<8x1xf32>
    %38 = arith.addf %36, %37 : vector<8x1xf32>
    %39 = math.rsqrt %38 : vector<8x1xf32>
    %40 = vector.broadcast %39 : vector<8x1xf32> to vector<8x64xf32>
    %41 = arith.mulf %31, %40 : vector<8x64xf32>
    %42 = vector.broadcast %27 : vector<1x64xf32> to vector<8x64xf32>
    %43 = arith.mulf %41, %42 : vector<8x64xf32>
    %44 = vector.broadcast %28 : vector<1x64xf32> to vector<8x64xf32>
    %45 = arith.addf %43, %44 : vector<8x64xf32>
    %cst_15 = arith.constant 0.000000e+00 : f32
    %46 = vector.broadcast %cst_15 : f32 to vector<8x64xf32>
    %47 = arith.maximumf %45, %46 : vector<8x64xf32>
    %c0_16 = arith.constant 0 : index
    %c0_17 = arith.constant 0 : index
    %48 = vector.load %arg4[%c0_16, %c0_17] : memref<64x64xf32, #tpu.memory_space<vmem>>, vector<64x64xf32>
    %49 = vector.extract_strided_slice %1 {offsets = [6, 0], sizes = [1, 64], strides = [1, 1]} : vector<16x64xf32> to vector<1x64xf32>
    %50 = vector.extract_strided_slice %1 {offsets = [7, 0], sizes = [1, 64], strides = [1, 1]} : vector<16x64xf32> to vector<1x64xf32>
    %51 = vector.extract_strided_slice %1 {offsets = [8, 0], sizes = [1, 64], strides = [1, 1]} : vector<16x64xf32> to vector<1x64xf32>
    %cst_18 = arith.constant dense<0.000000e+00> : vector<8x64xf32>
    %52 = tpu.matmul %47, %48, %cst_18 {dimension_numbers = #tpu.dot_dimension_numbers<[1], [0], [0], [1], [0, 0, 1, 1], [], []>} : vector<8x64xf32>, vector<64x64xf32>, vector<8x64xf32> -> vector<8x64xf32>
    %53 = vector.broadcast %49 : vector<1x64xf32> to vector<8x64xf32>
    %54 = arith.addf %52, %53 : vector<8x64xf32>
    %55 = arith.mulf %54, %54 : vector<8x64xf32>
    %cst_19 = arith.constant dense<0.000000e+00> : vector<8xf32>
    %56 = vector.multi_reduction <add>, %55, %cst_19 [1] : vector<8x64xf32> to vector<8xf32>
    %57 = vector.shape_cast %56 : vector<8xf32> to vector<8x1xf32>
    %cst_20 = arith.constant 6.400000e+01 : f32
    %58 = vector.broadcast %cst_20 : f32 to vector<8x1xf32>
    %59 = arith.divf %57, %58 : vector<8x1xf32>
    %cst_21 = arith.constant 9.99999974E-6 : f32
    %60 = vector.broadcast %cst_21 : f32 to vector<8x1xf32>
    %61 = arith.addf %59, %60 : vector<8x1xf32>
    %62 = math.rsqrt %61 : vector<8x1xf32>
    %63 = vector.broadcast %62 : vector<8x1xf32> to vector<8x64xf32>
    %64 = arith.mulf %54, %63 : vector<8x64xf32>
    %65 = vector.broadcast %50 : vector<1x64xf32> to vector<8x64xf32>
    %66 = arith.mulf %64, %65 : vector<8x64xf32>
    %67 = vector.broadcast %51 : vector<1x64xf32> to vector<8x64xf32>
    %68 = arith.addf %66, %67 : vector<8x64xf32>
    %cst_22 = arith.constant 0.000000e+00 : f32
    %69 = vector.broadcast %cst_22 : f32 to vector<8x64xf32>
    %70 = arith.maximumf %68, %69 : vector<8x64xf32>
    %71 = vector.extract_strided_slice %1 {offsets = [9, 0], sizes = [1, 64], strides = [1, 1]} : vector<16x64xf32> to vector<1x64xf32>
    %72 = vector.extract_strided_slice %1 {offsets = [10, 0], sizes = [1, 1], strides = [1, 1]} : vector<16x64xf32> to vector<1x1xf32>
    %73 = tpu.transpose %70, [1, 0] : vector<8x64xf32> -> vector<64x8xf32>
    %cst_23 = arith.constant dense<0.000000e+00> : vector<1x8xf32>
    %74 = tpu.matmul %71, %73, %cst_23 {dimension_numbers = #tpu.dot_dimension_numbers<[1], [0], [0], [1], [0, 0, 1, 1], [], []>} : vector<1x64xf32>, vector<64x8xf32>, vector<1x8xf32> -> vector<1x8xf32>
    %75 = vector.broadcast %72 : vector<1x1xf32> to vector<1x8xf32>
    %76 = arith.addf %74, %75 : vector<1x8xf32>
    %c0_24 = arith.constant 0 : index
    %c0_25 = arith.constant 0 : index
    %77 = vector.load %arg6[%c0_24, %c0_25] : memref<1x8xf32, #tpu.memory_space<vmem>>, vector<1x8xf32>
    tpu.vector_store %arg6[%c0_24, %c0_25], %76 {strides = array<i32>} : memref<1x8xf32, #tpu.memory_space<vmem>>, vector<1x8xf32>,
    return
  }
  func.func @transform_0(%arg0: i32) -> (i32, i32) {
    %c0_i32 = arith.constant 0 : i32
    %c0_i32_0 = arith.constant 0 : i32
    return %arg0, %c0_i32 : i32, i32
  }
  func.func @transform_1(%arg0: i32) -> (i32, i32) {
    %c0_i32 = arith.constant 0 : i32
    %c0_i32_0 = arith.constant 0 : i32
    %c0_i32_1 = arith.constant 0 : i32
    return %c0_i32, %c0_i32_0 : i32, i32
  }
  func.func @transform_2(%arg0: i32) -> (i32, i32) {
    %c0_i32 = arith.constant 0 : i32
    %c0_i32_0 = arith.constant 0 : i32
    %c0_i32_1 = arith.constant 0 : i32
    return %c0_i32, %c0_i32_0 : i32, i32
  }
  func.func @transform_3(%arg0: i32) -> (i32, i32) {
    %c0_i32 = arith.constant 0 : i32
    %c0_i32_0 = arith.constant 0 : i32
    %c0_i32_1 = arith.constant 0 : i32
    return %c0_i32, %c0_i32_0 : i32, i32
  }
  func.func @transform_4(%arg0: i32) -> (i32, i32) {
    %c0_i32 = arith.constant 0 : i32
    %c0_i32_0 = arith.constant 0 : i32
    %c0_i32_1 = arith.constant 0 : i32
    return %c0_i32, %c0_i32_0 : i32, i32
  }
  func.func @transform_5(%arg0: i32) -> (i32, i32) {
    %c0_i32 = arith.constant 0 : i32
    %c0_i32_0 = arith.constant 0 : i32
    return %c0_i32, %arg0 : i32, i32
  }
}

</mosaic_0001>

<llo_original>
// kernel: tpu_custom_call.1
$region0: #{tpu_custom_call.1}
  #allocation0 [shape = 'u32[]', space=smem, size = 0x4, offset = 0x4, fixed_abs, tag = 'smem constant byte address 0x4 - core index']
  #allocation1 [shape = 'u32[144,128]{1,0:T(1,128)}', space=vmem, size = 0x12000, scoped, tag = 'internal scratch']
  %s0 = inlined_call_operand.hbm [shape: f32[8,16], index: 0, kind: input, shape index: {}]
  %s1 = inlined_call_operand.hbm [shape: f32[16,64], index: 1, kind: input, shape index: {}]
  %s2 = inlined_call_operand.hbm [shape: f32[64,64], index: 2, kind: input, shape index: {}]
  %s3 = inlined_call_operand.hbm [shape: f32[64,64], index: 3, kind: input, shape index: {}]
  %s4 = inlined_call_operand.hbm [shape: f32[16,64], index: 4, kind: input, shape index: {}]
  %s5 = inlined_call_operand.hbm [shape: f32[1,8], index: 5, kind: output, shape index: {}]
  %s6 = sld [smem:[#allocation0]]
  $region50: #{tpu_custom_call.1} parent=0
    _
  %s8 = ssub.s32 1, %s6
  %s9 = scalar_select 0, %s8, %s6
  $region1: #{tpu_custom_call.1} parent=0
    #allocation2 [shape = 'u8[4096]{0}', space=vmem, size = 0x1000, scoped, tag = 'input window, operand 0, single buffered']
    #allocation3 [shape = 's32[1]{0}', space=sflag, size = 0x4, scoped, tag = 'scoped memory for tpu_custom_call.1']
    #allocation4 [shape = 's32[1]{0}', space=sflag, size = 0x4, scoped, tag = 'scoped memory for tpu_custom_call.1']
    #allocation5 [shape = 'u8[8192]{0}', space=vmem, size = 0x2000, scoped, tag = 'input window, operand 1, single buffered']
    #allocation6 [shape = 's32[1]{0}', space=sflag, size = 0x4, scoped, tag = 'scoped memory for tpu_custom_call.1']
    #allocation7 [shape = 'u8[32768]{0}', space=vmem, size = 0x8000, scoped, tag = 'input window, operand 2, single buffered']
    #allocation8 [shape = 'u8[32768]{0}', space=vmem, size = 0x8000, scoped, tag = 'input window, operand 3, single buffered']
    #allocation9 [shape = 's32[1]{0}', space=sflag, size = 0x4, scoped, tag = 'scoped memory for tpu_custom_call.1']
    #allocation10 [shape = 'u8[8192]{0}', space=vmem, size = 0x2000, scoped, tag = 'input window, operand 4, single buffered']
    #allocation11 [shape = 'u8[512]{0}', space=vmem, size = 0x400, scoped, tag = 'output window, operand 0, single buffered']
    %10 = vsyncpa [#allocation3], 0
    %11 = vsyncpa [#allocation6], 0
    %12 = vsyncpa [#allocation9], 0
    %13 = vsyncpa [#allocation4], 0
    // Predicated region
    $region2: #{tpu_custom_call.1} parent=1 // pred_check
      _
    $region3: #{tpu_custom_call.1} parent=1 // pred_check_branch
      %15 = sbr.rel (0) target = $region5
    $region4: #{tpu_custom_call.1} parent=1 // pred_region
      %s17 = ssub.s32 128, 128
      %18 = vsyncadd [#allocation3], %s17
      %s20 = sshll.u32 [#allocation2], 4
      %s21 = int_to_ptr.vmem [resolvable:$true] %s20
      %23 = dma.hbm_to_vmem [thread:$0]  %s0, 128, %s21, [#allocation3]
    $region5: #{tpu_custom_call.1} parent=1 // pred_fallthru
      _
    // Predicated region
    $region6: #{tpu_custom_call.1} parent=1 // pred_check
      _
    $region7: #{tpu_custom_call.1} parent=1 // pred_check_branch
      %25 = sbr.rel (0) target = $region9
    $region8: #{tpu_custom_call.1} parent=1 // pred_region
      %s27 = ssub.s32 256, 256
      %28 = vsyncadd [#allocation6], %s27
      %s29 = sshll.u32 [#allocation5], 4
      %s30 = int_to_ptr.vmem [resolvable:$true] %s29
      %35 = dma.hbm_to_vmem [thread:$0]  %s1, 256, %s30, [#allocation6], 128, 128, 8
    $region9: #{tpu_custom_call.1} parent=1 // pred_fallthru
      _
    // Predicated region
    $region10: #{tpu_custom_call.1} parent=1 // pred_check
      _
    $region11: #{tpu_custom_call.1} parent=1 // pred_check_branch
      %37 = sbr.rel (0) target = $region13
    $region12: #{tpu_custom_call.1} parent=1 // pred_region
      %s39 = ssub.s32 1024, 1024
      %40 = vsyncadd [#allocation6], %s39
      %s41 = sshll.u32 [#allocation7], 4
      %s42 = int_to_ptr.vmem [resolvable:$true] %s41
      %47 = dma.hbm_to_vmem [thread:$0]  %s2, 1024, %s42, [#allocation6], 128, 128, 8
    $region13: #{tpu_custom_call.1} parent=1 // pred_fallthru
      _
    // Predicated region
    $region14: #{tpu_custom_call.1} parent=1 // pred_check
      _
    $region15: #{tpu_custom_call.1} parent=1 // pred_check_branch
      %49 = sbr.rel (0) target = $region17
    $region16: #{tpu_custom_call.1} parent=1 // pred_region
      %s51 = ssub.s32 1024, 1024
      %52 = vsyncadd [#allocation9], %s51
      %s53 = sshll.u32 [#allocation8], 4
      %s54 = int_to_ptr.vmem [resolvable:$true] %s53
      %59 = dma.hbm_to_vmem [thread:$0]  %s3, 1024, %s54, [#allocation9], 128, 128, 8
    $region17: #{tpu_custom_call.1} parent=1 // pred_fallthru
      _
    // Predicated region
    $region18: #{tpu_custom_call.1} parent=1 // pred_check
      _
    $region19: #{tpu_custom_call.1} parent=1 // pred_check_branch
      %61 = sbr.rel (0) target = $region21
    $region20: #{tpu_custom_call.1} parent=1 // pred_region
      %s63 = ssub.s32 256, 256
      %64 = vsyncadd [#allocation9], %s63
      %s65 = sshll.u32 [#allocation10], 4
      %s66 = int_to_ptr.vmem [resolvable:$true] %s65
      %71 = dma.hbm_to_vmem [thread:$0]  %s4, 256, %s66, [#allocation9], 128, 128, 8
    $region21: #{tpu_custom_call.1} parent=1 // pred_fallthru
      _
    // Predicated region
    $region22: #{tpu_custom_call.1} parent=1 // pred_check
      _
    $region23: #{tpu_custom_call.1} parent=1 // pred_check_branch
      %73 = sbr.rel (0) target = $region25
    $region24: #{tpu_custom_call.1} parent=1 // pred_region
      %74 = dma.done [#allocation3], 128
    $region25: #{tpu_custom_call.1} parent=1 // pred_fallthru
      _
    // Predicated region
    $region26: #{tpu_custom_call.1} parent=1 // pred_check
      _
    $region27: #{tpu_custom_call.1} parent=1 // pred_check_branch
      %76 = sbr.rel (0) target = $region29
    $region28: #{tpu_custom_call.1} parent=1 // pred_region
      %77 = dma.done [#allocation6], 256
    $region29: #{tpu_custom_call.1} parent=1 // pred_fallthru
      _
    // Predicated region
    $region30: #{tpu_custom_call.1} parent=1 // pred_check
      _
    $region31: #{tpu_custom_call.1} parent=1 // pred_check_branch
      %79 = sbr.rel (0) target = $region33
    $region32: #{tpu_custom_call.1} parent=1 // pred_region
      %80 = dma.done [#allocation6], 1024
    $region33: #{tpu_custom_call.1} parent=1 // pred_fallthru
      _
    // Predicated region
    $region34: #{tpu_custom_call.1} parent=1 // pred_check
      _
    $region35: #{tpu_custom_call.1} parent=1 // pred_check_branch
      %82 = sbr.rel (0) target = $region37
    $region36: #{tpu_custom_call.1} parent=1 // pred_region
      %83 = dma.done [#allocation9], 1024
    $region37: #{tpu_custom_call.1} parent=1 // pred_fallthru
      _
    // Predicated region
    $region38: #{tpu_custom_call.1} parent=1 // pred_check
      _
    $region39: #{tpu_custom_call.1} parent=1 // pred_check_branch
      %85 = sbr.rel (0) target = $region41
    $region40: #{tpu_custom_call.1} parent=1 // pred_region
      %86 = dma.done [#allocation9], 256
    $region41: #{tpu_custom_call.1} parent=1 // pred_fallthru
      _
    %v87 = vld [vmem:[#allocation2] sm:$0xff]
    %v88 = vld [vmem:[#allocation10] sm:$0xff]
    %v89 = vld [vmem:[#allocation10 + $0x8] sm:$0xff]
    %v90 = vld [vmem:[#allocation5] sm:$0xff]
    %v91 = vld [vmem:[#allocation5 + $0x8] sm:$0xff]
    %v92 = vlaneseq
    %v93 = vshrl.u32 %v92, 7
    %v94 = vsub.s32 0, %v93
    %v95 = vrot.slane %v88, %v94
    %vm96 = vcmask 130048
    %v98 = vsel %vm96, %v87, 0
    %100 = vmatprep.subr.mxu0 0.0
    %101 = vmatpush1.msra.mxu0 %v90
    %102 = vmatprep.subr.mxu0 0.0
    %103 = vmatpush1.msra.mxu0 %v91
    %104 = vmatprep.subr.mxu0 0.0
    %105 = vmatpush1.msra.mxu0 0.0
    %106 = vmatprep.subr.mxu0 0.0
    %107 = vmatpush1.msra.mxu0 0.0
    %108 = vmatprep.subr.mxu0 0.0
    %109 = vmatpush1.msra.mxu0 0.0
    %110 = vmatprep.subr.mxu0 0.0
    %111 = vmatpush1.msra.mxu0 0.0
    %112 = vmatprep.subr.mxu0 0.0
    %113 = vmatpush1.msra.mxu0 0.0
    %114 = vmatprep.subr.mxu0 0.0
    %115 = vmatpush1.msra.mxu0 0.0
    %116 = vmatprep.subr.mxu0 0.0
    %117 = vmatpush1.msra.mxu0 0.0
    %118 = vmatprep.subr.mxu0 0.0
    %119 = vmatpush1.msra.mxu0 0.0
    %120 = vmatprep.subr.mxu0 0.0
    %121 = vmatpush1.msra.mxu0 0.0
    %122 = vmatprep.subr.mxu0 0.0
    %123 = vmatpush1.msra.mxu0 0.0
    %124 = vmatprep.subr.mxu0 0.0
    %125 = vmatpush1.msra.mxu0 0.0
    %126 = vmatprep.subr.mxu0 0.0
    %127 = vmatpush1.msra.mxu0 0.0
    %128 = vmatprep.subr.mxu0 0.0
    %129 = vmatpush1.msra.mxu0 0.0
    %130 = vmatprep.subr.mxu0 0.0
    %131 = vmatpush1.msra.mxu0 0.0
    %132 = vmatprep.subr.mxu0 0.0
    %133 = vmatpush1.msra.mxu0 0.0
    %134 = vmatprep.subr.mxu0 0.0
    %135 = vmatpush1.msra.mxu0 0.0
    %136 = vmatprep.subr.mxu0 0.0
    %137 = vmatpush1.msra.mxu0 0.0
    %138 = vmatprep.subr.mxu0 0.0
    %139 = vmatpush1.msra.mxu0 0.0
    %140 = vmatprep.subr.mxu0 0.0
    %141 = vmatpush1.msra.mxu0 0.0
    %142 = vmatprep.subr.mxu0 0.0
    %143 = vmatpush1.msra.mxu0 0.0
    %144 = vmatprep.subr.mxu0 0.0
    %145 = vmatpush1.msra.mxu0 0.0
    %146 = vmatprep.subr.mxu0 0.0
    %147 = vmatpush1.msra.mxu0 0.0
    %148 = vmatprep.subr.mxu0 0.0
    %149 = vmatpush1.msra.mxu0 0.0
    %150 = vmatprep.subr.mxu0 0.0
    %151 = vmatpush1.msra.mxu0 0.0
    %152 = vmatprep.subr.mxu0 0.0
    %153 = vmatpush1.msra.mxu0 0.0
    %154 = vmatprep.subr.mxu0 0.0
    %155 = vmatpush1.msra.mxu0 0.0
    %156 = vmatprep.subr.mxu0 0.0
    %157 = vmatpush1.msra.mxu0 0.0
    %158 = vmatprep.subr.mxu0 0.0
    %159 = vmatpush1.msra.mxu0 0.0
    %160 = vmatprep.subr.mxu0 0.0
    %161 = vmatpush1.msra.mxu0 0.0
    %162 = vmatprep.subr.mxu0 0.0
    %163 = vmatpush1.msra.mxu0 0.0
    %164 = vmatprep.mubr.f32.mxu0 0.0
    %165 = vmatmul.mubr.f32.gmra.mrb[0].mxu0 %v98
    %v166 = vpop.f32.mrb[0].mxu0
    %v167 = vadd.f32 %v95, %v166
    %v168 = vpop.f32.mrb[0].mxu0
    %169 = vdwg.mxu0
    %v170 = vmul.f32 %v167, %v167
    %vm171 = vcmask 523264
    %v172 = vsel %vm171, %v170, 0.0
    %173 = vadd.xlane.f32.xlu0 %v172
    %v174 = vpop.xlane.xlu0 %173
    %v175 = vrcp.pop 64.0
    %v176 = vmul.f32 %v174, %v175
    %v177 = vadd.f32 %v176, 1e-05
    %v178 = vrsqrt.pop %v177
    %v179 = vmul.f32 %v167, %v178
    %v180 = vlaneseq
    %v181 = vshrl.u32 %v180, 7
    %v182 = vsub.s32 1, %v181
    %v183 = vrot.slane %v88, %v182
    %v184 = vmul.f32 %v179, %v183
    %v185 = vlaneseq
    %v186 = vshrl.u32 %v185, 7
    %v187 = vsub.s32 2, %v186
    %v188 = vrot.slane %v88, %v187
    %v189 = vadd.f32 %v184, %v188
    %v190 = vmax.f32 %v189, 0.0
    %v191 = vld [vmem:[#allocation7] sm:$0xff]
    %v192 = vld [vmem:[#allocation7 + $0x8] sm:$0xff]
    %v193 = vld [vmem:[#allocation7 + $0x10] sm:$0xff]
    %v194 = vld [vmem:[#allocation7 + $0x18] sm:$0xff]
    %v195 = vld [vmem:[#allocation7 + $0x20] sm:$0xff]
    %v196 = vld [vmem:[#allocation7 + $0x28] sm:$0xff]
    %v197 = vld [vmem:[#allocation7 + $0x30] sm:$0xff]
    %v198 = vld [vmem:[#allocation7 + $0x38] sm:$0xff]
    %v199 = vlaneseq
    %v200 = vshrl.u32 %v199, 7
    %v201 = vsub.s32 3, %v200
    %v202 = vrot.slane %v88, %v201
    %v204 = vsel %vm171, %v190, 0
    %206 = vmatprep.subr.mxu0 0.0
    %207 = vmatpush1.msra.mxu0 %v191
    %208 = vmatprep.subr.mxu0 0.0
    %209 = vmatpush1.msra.mxu0 %v192
    %210 = vmatprep.subr.mxu0 0.0
    %211 = vmatpush1.msra.mxu0 %v193
    %212 = vmatprep.subr.mxu0 0.0
    %213 = vmatpush1.msra.mxu0 %v194
    %214 = vmatprep.subr.mxu0 0.0
    %215 = vmatpush1.msra.mxu0 %v195
    %216 = vmatprep.subr.mxu0 0.0
    %217 = vmatpush1.msra.mxu0 %v196
    %218 = vmatprep.subr.mxu0 0.0
    %219 = vmatpush1.msra.mxu0 %v197
    %220 = vmatprep.subr.mxu0 0.0
    %221 = vmatpush1.msra.mxu0 %v198
    %222 = vmatprep.subr.mxu0 0.0
    %223 = vmatpush1.msra.mxu0 0.0
    %224 = vmatprep.subr.mxu0 0.0
    %225 = vmatpush1.msra.mxu0 0.0
    %226 = vmatprep.subr.mxu0 0.0
    %227 = vmatpush1.msra.mxu0 0.0
    %228 = vmatprep.subr.mxu0 0.0
    %229 = vmatpush1.msra.mxu0 0.0
    %230 = vmatprep.subr.mxu0 0.0
    %231 = vmatpush1.msra.mxu0 0.0
    %232 = vmatprep.subr.mxu0 0.0
    %233 = vmatpush1.msra.mxu0 0.0
    %234 = vmatprep.subr.mxu0 0.0
    %235 = vmatpush1.msra.mxu0 0.0
    %236 = vmatprep.subr.mxu0 0.0
    %237 = vmatpush1.msra.mxu0 0.0
    %238 = vmatprep.subr.mxu0 0.0
    %239 = vmatpush1.msra.mxu0 0.0
    %240 = vmatprep.subr.mxu0 0.0
    %241 = vmatpush1.msra.mxu0 0.0
    %242 = vmatprep.subr.mxu0 0.0
    %243 = vmatpush1.msra.mxu0 0.0
    %244 = vmatprep.subr.mxu0 0.0
    %245 = vmatpush1.msra.mxu0 0.0
    %246 = vmatprep.subr.mxu0 0.0
    %247 = vmatpush1.msra.mxu0 0.0
    %248 = vmatprep.subr.mxu0 0.0
    %249 = vmatpush1.msra.mxu0 0.0
    %250 = vmatprep.subr.mxu0 0.0
    %251 = vmatpush1.msra.mxu0 0.0
    %252 = vmatprep.subr.mxu0 0.0
    %253 = vmatpush1.msra.mxu0 0.0
    %254 = vmatprep.subr.mxu0 0.0
    %255 = vmatpush1.msra.mxu0 0.0
    %256 = vmatprep.subr.mxu0 0.0
    %257 = vmatpush1.msra.mxu0 0.0
    %258 = vmatprep.subr.mxu0 0.0
    %259 = vmatpush1.msra.mxu0 0.0
    %260 = vmatprep.subr.mxu0 0.0
    %261 = vmatpush1.msra.mxu0 0.0
    %262 = vmatprep.subr.mxu0 0.0
    %263 = vmatpush1.msra.mxu0 0.0
    %264 = vmatprep.subr.mxu0 0.0
    %265 = vmatpush1.msra.mxu0 0.0
    %266 = vmatprep.subr.mxu0 0.0
    %267 = vmatpush1.msra.mxu0 0.0
    %268 = vmatprep.subr.mxu0 0.0
    %269 = vmatpush1.msra.mxu0 0.0
    %270 = vmatprep.mubr.f32.mxu0 0.0
    %271 = vmatmul.mubr.f32.gmra.mrb[0].mxu0 %v204
    %v272 = vpop.f32.mrb[0].mxu0
    %v273 = vadd.f32 %v202, %v272
    %v274 = vpop.f32.mrb[0].mxu0
    %275 = vdwg.mxu0
    %v276 = vmul.f32 %v273, %v273
    %v277 = vsel %vm171, %v276, 0.0
    %278 = vadd.xlane.f32.xlu0 %v277
    %v279 = vpop.xlane.xlu0 %278
    %v280 = vmul.f32 %v279, %v175
    %v281 = vadd.f32 %v280, 1e-05
    %v282 = vrsqrt.pop %v281
    %v283 = vmul.f32 %v273, %v282
    %v284 = vlaneseq
    %v285 = vshrl.u32 %v284, 7
    %v286 = vsub.s32 4, %v285
    %v287 = vrot.slane %v88, %v286
    %v288 = vmul.f32 %v283, %v287
    %v289 = vlaneseq
    %v290 = vshrl.u32 %v289, 7
    %v291 = vsub.s32 5, %v290
    %v292 = vrot.slane %v88, %v291
    %v293 = vadd.f32 %v288, %v292
    %v294 = vmax.f32 %v293, 0.0
    %v295 = vld [vmem:[#allocation8] sm:$0xff]
    %v296 = vld [vmem:[#allocation8 + $0x8] sm:$0xff]
    %v297 = vld [vmem:[#allocation8 + $0x10] sm:$0xff]
    %v298 = vld [vmem:[#allocation8 + $0x18] sm:$0xff]
    %v299 = vld [vmem:[#allocation8 + $0x20] sm:$0xff]
    %v300 = vld [vmem:[#allocation8 + $0x28] sm:$0xff]
    %v301 = vld [vmem:[#allocation8 + $0x30] sm:$0xff]
    %v302 = vld [vmem:[#allocation8 + $0x38] sm:$0xff]
    %v303 = vlaneseq
    %v304 = vshrl.u32 %v303, 7
    %v305 = vsub.s32 6, %v304
    %v306 = vrot.slane %v88, %v305
    %v308 = vsel %vm171, %v294, 0
    %310 = vmatprep.subr.mxu0 0.0
    %311 = vmatpush1.msra.mxu0 %v295
    %312 = vmatprep.subr.mxu0 0.0
    %313 = vmatpush1.msra.mxu0 %v296
    %314 = vmatprep.subr.mxu0 0.0
    %315 = vmatpush1.msra.mxu0 %v297
    %316 = vmatprep.subr.mxu0 0.0
    %317 = vmatpush1.msra.mxu0 %v298
    %318 = vmatprep.subr.mxu0 0.0
    %319 = vmatpush1.msra.mxu0 %v299
    %320 = vmatprep.subr.mxu0 0.0
    %321 = vmatpush1.msra.mxu0 %v300
    %322 = vmatprep.subr.mxu0 0.0
    %323 = vmatpush1.msra.mxu0 %v301
    %324 = vmatprep.subr.mxu0 0.0
    %325 = vmatpush1.msra.mxu0 %v302
    %326 = vmatprep.subr.mxu0 0.0
    %327 = vmatpush1.msra.mxu0 0.0
    %328 = vmatprep.subr.mxu0 0.0
    %329 = vmatpush1.msra.mxu0 0.0
    %330 = vmatprep.subr.mxu0 0.0
    %331 = vmatpush1.msra.mxu0 0.0
    %332 = vmatprep.subr.mxu0 0.0
    %333 = vmatpush1.msra.mxu0 0.0
    %334 = vmatprep.subr.mxu0 0.0
    %335 = vmatpush1.msra.mxu0 0.0
    %336 = vmatprep.subr.mxu0 0.0
    %337 = vmatpush1.msra.mxu0 0.0
    %338 = vmatprep.subr.mxu0 0.0
    %339 = vmatpush1.msra.mxu0 0.0
    %340 = vmatprep.subr.mxu0 0.0
    %341 = vmatpush1.msra.mxu0 0.0
    %342 = vmatprep.subr.mxu0 0.0
    %343 = vmatpush1.msra.mxu0 0.0
    %344 = vmatprep.subr.mxu0 0.0
    %345 = vmatpush1.msra.mxu0 0.0
    %346 = vmatprep.subr.mxu0 0.0
    %347 = vmatpush1.msra.mxu0 0.0
    %348 = vmatprep.subr.mxu0 0.0
    %349 = vmatpush1.msra.mxu0 0.0
    %350 = vmatprep.subr.mxu0 0.0
    %351 = vmatpush1.msra.mxu0 0.0
    %352 = vmatprep.subr.mxu0 0.0
    %353 = vmatpush1.msra.mxu0 0.0
    %354 = vmatprep.subr.mxu0 0.0
    %355 = vmatpush1.msra.mxu0 0.0
    %356 = vmatprep.subr.mxu0 0.0
    %357 = vmatpush1.msra.mxu0 0.0
    %358 = vmatprep.subr.mxu0 0.0
    %359 = vmatpush1.msra.mxu0 0.0
    %360 = vmatprep.subr.mxu0 0.0
    %361 = vmatpush1.msra.mxu0 0.0
    %362 = vmatprep.subr.mxu0 0.0
    %363 = vmatpush1.msra.mxu0 0.0
    %364 = vmatprep.subr.mxu0 0.0
    %365 = vmatpush1.msra.mxu0 0.0
    %366 = vmatprep.subr.mxu0 0.0
    %367 = vmatpush1.msra.mxu0 0.0
    %368 = vmatprep.subr.mxu0 0.0
    %369 = vmatpush1.msra.mxu0 0.0
    %370 = vmatprep.subr.mxu0 0.0
    %371 = vmatpush1.msra.mxu0 0.0
    %372 = vmatprep.subr.mxu0 0.0
    %373 = vmatpush1.msra.mxu0 0.0
    %374 = vmatprep.mubr.f32.mxu0 0.0
    %375 = vmatmul.mubr.f32.gmra.mrb[0].mxu0 %v308
    %v376 = vpop.f32.mrb[0].mxu0
    %v377 = vadd.f32 %v306, %v376
    %v378 = vpop.f32.mrb[0].mxu0
    %379 = vdwg.mxu0
    %v380 = vmul.f32 %v377, %v377
    %v381 = vsel %vm171, %v380, 0.0
    %382 = vadd.xlane.f32.xlu0 %v381
    %v383 = vpop.xlane.xlu0 %382
    %v384 = vmul.f32 %v383, %v175
    %v385 = vadd.f32 %v384, 1e-05
    %v386 = vrsqrt.pop %v385
    %v387 = vmul.f32 %v377, %v386
    %v388 = vlaneseq
    %v389 = vshrl.u32 %v388, 7
    %v390 = vsub.s32 7, %v389
    %v391 = vrot.slane %v88, %v390
    %v392 = vmul.f32 %v387, %v391
    %v393 = vlaneseq
    %v394 = vshrl.u32 %v393, 7
    %v395 = vsub.s32 0, %v394
    %v396 = vrot.slane %v89, %v395
    %v397 = vadd.f32 %v392, %v396
    %v398 = vmax.f32 %v397, 0.0
    %400 = vset.pattern.permute.xlu0 0
    %401 = vperm.xlu0 %400, %v89
    %v402 = vpop.permute.xlu0 %401
    %v403 = vrot.slane %v89, 1
    %v404 = vrot.slane %v402, 2
    %v406 = vsel %vm171, %v403, 0
    %v409 = vsel %vm171, %v398, 0
    %411 = vmatprep.subr.mxu0 0.0
    %412 = vmatpush1.xpose.msra.mxu0 %v409
    %413 = vmatprep.subr.mxu0 0.0
    %414 = vmatpush1.xpose.msra.mxu0 0.0
    %415 = vmatprep.subr.mxu0 0.0
    %416 = vmatpush1.xpose.msra.mxu0 0.0
    %417 = vmatprep.subr.mxu0 0.0
    %418 = vmatpush1.xpose.msra.mxu0 0.0
    %419 = vmatprep.subr.mxu0 0.0
    %420 = vmatpush1.xpose.msra.mxu0 0.0
    %421 = vmatprep.subr.mxu0 0.0
    %422 = vmatpush1.xpose.msra.mxu0 0.0
    %423 = vmatprep.subr.mxu0 0.0
    %424 = vmatpush1.xpose.msra.mxu0 0.0
    %425 = vmatprep.subr.mxu0 0.0
    %426 = vmatpush1.xpose.msra.mxu0 0.0
    %427 = vmatprep.subr.mxu0 0.0
    %428 = vmatpush1.xpose.msra.mxu0 0.0
    %429 = vmatprep.subr.mxu0 0.0
    %430 = vmatpush1.xpose.msra.mxu0 0.0
    %431 = vmatprep.subr.mxu0 0.0
    %432 = vmatpush1.xpose.msra.mxu0 0.0
    %433 = vmatprep.subr.mxu0 0.0
    %434 = vmatpush1.xpose.msra.mxu0 0.0
    %435 = vmatprep.subr.mxu0 0.0
    %436 = vmatpush1.xpose.msra.mxu0 0.0
    %437 = vmatprep.subr.mxu0 0.0
    %438 = vmatpush1.xpose.msra.mxu0 0.0
    %439 = vmatprep.subr.mxu0 0.0
    %440 = vmatpush1.xpose.msra.mxu0 0.0
    %441 = vmatprep.subr.mxu0 0.0
    %442 = vmatpush1.xpose.msra.mxu0 0.0
    %443 = vmatprep.subr.mxu0 0.0
    %444 = vmatpush1.xpose.msra.mxu0 0.0
    %445 = vmatprep.subr.mxu0 0.0
    %446 = vmatpush1.xpose.msra.mxu0 0.0
    %447 = vmatprep.subr.mxu0 0.0
    %448 = vmatpush1.xpose.msra.mxu0 0.0
    %449 = vmatprep.subr.mxu0 0.0
    %450 = vmatpush1.xpose.msra.mxu0 0.0
    %451 = vmatprep.subr.mxu0 0.0
    %452 = vmatpush1.xpose.msra.mxu0 0.0
    %453 = vmatprep.subr.mxu0 0.0
    %454 = vmatpush1.xpose.msra.mxu0 0.0
    %455 = vmatprep.subr.mxu0 0.0
    %456 = vmatpush1.xpose.msra.mxu0 0.0
    %457 = vmatprep.subr.mxu0 0.0
    %458 = vmatpush1.xpose.msra.mxu0 0.0
    %459 = vmatprep.subr.mxu0 0.0
    %460 = vmatpush1.xpose.msra.mxu0 0.0
    %461 = vmatprep.subr.mxu0 0.0
    %462 = vmatpush1.xpose.msra.mxu0 0.0
    %463 = vmatprep.subr.mxu0 0.0
    %464 = vmatpush1.xpose.msra.mxu0 0.0
    %465 = vmatprep.subr.mxu0 0.0
    %466 = vmatpush1.xpose.msra.mxu0 0.0
    %467 = vmatprep.subr.mxu0 0.0
    %468 = vmatpush1.xpose.msra.mxu0 0.0
    %469 = vmatprep.subr.mxu0 0.0
    %470 = vmatpush1.xpose.msra.mxu0 0.0
    %471 = vmatprep.subr.mxu0 0.0
    %472 = vmatpush1.xpose.msra.mxu0 0.0
    %473 = vmatprep.subr.mxu0 0.0
    %474 = vmatpush1.xpose.msra.mxu0 0.0
    %475 = vmatprep.mubr.f32.mxu0 0.0
    %476 = vmatmul.mubr.f32.gmra.mrb[0].mxu0 %v406
    %v477 = vpop.f32.mrb[0].mxu0
    %v478 = vadd.f32 %v404, %v477
    %v479 = vpop.f32.mrb[0].mxu0
    %480 = vdwg.mxu0
    %vm481 = vcmask 57344
    %482 = vst.msk [vmem:[#allocation11] sm:$0x1] %vm481, %v478
    // Predicated region
    $region42: #{tpu_custom_call.1} parent=1 // pred_check
      _
    $region43: #{tpu_custom_call.1} parent=1 // pred_check_branch
      %484 = sbr.rel (0) target = $region45
    $region44: #{tpu_custom_call.1} parent=1 // pred_region
      %s486 = ssub.s32 16, 16
      %487 = vsyncadd [#allocation4], %s486
      %s489 = sshll.u32 [#allocation11], 4
      %s490 = int_to_ptr.vmem [resolvable:$true] %s489
      %492 = dma.vmem_to_hbm [thread:$0]  %s490, 16, %s5, [#allocation4]
    $region45: #{tpu_custom_call.1} parent=1 // pred_fallthru
      _
    // Predicated region
    $region46: #{tpu_custom_call.1} parent=1 // pred_check
      _
    $region47: #{tpu_custom_call.1} parent=1 // pred_check_branch
      %494 = sbr.rel (0) target = $region49
    $region48: #{tpu_custom_call.1} parent=1 // pred_region
      %495 = dma.done [#allocation4], 16
    $region49: #{tpu_custom_call.1} parent=1 // pred_fallthru
      _
    %496 = vsyncpa [#allocation3], 1
    %497 = vsyncpa [#allocation6], 1
    %498 = vsyncpa [#allocation9], 1
    %499 = vsyncpa [#allocation4], 1

</llo_original>
